<compile_context>
chip_gen: v5e
topology: v5e:2x2
jax: 0.10.0
libtpu: 0.0.40
codegen_flags: <defaults>
</compile_context>

<pallas_src>
import jax
import jax.numpy as jnp
import numpy as np
from jax.experimental import pallas as pl
from jax.experimental.pallas import tpu as pltpu  # noqa: F401  (TPU backend)


def single_layer_kernel(x_ref, patches_ref, w_ref, bias_ref, o_ref):
    # x_ref      : (N, Cin, HW)       raw input (passthrough for the concat)
    # patches_ref: (N, 9*Cin, HW)     im2col of the raw input (zero-pad border)
    # w_ref      : (Cout, 9*Cin)      conv weights with the BN scale folded in
    # bias_ref   : (Cout, HW)         position-dependent bias = Conv(BN shift)
    # o_ref      : (N, Cin+Cout, HW)  = cat([x, ReLU(conv)], channel dim)
    n_batch, cin, _ = x_ref.shape
    w = w_ref[...]
    bias = bias_ref[...]
    for n in range(n_batch):  # tiny static unroll (N=2)
        conv = jnp.dot(w, patches_ref[n], preferred_element_type=jnp.float32)
        o_ref[n, :cin, :] = x_ref[n]                         # x passthrough
        o_ref[n, cin:, :] = jnp.maximum(conv + bias, 0.0)    # bias + ReLU
    # Dropout2d(p=0.1): identity in eval mode.


def prepare_single_layer_params(gamma, beta, running_mean, running_var, w_oihw,
                                H, W, eps=1e-5):
    """Parameter-only preprocessing -- hoisted out of the per-call path."""
    Cout, Cin, KH, KW = w_oihw.shape
    w = w_oihw.astype(jnp.float32)

    # BN (eval) as a per-channel affine: BN(x) = scale*x + shift.
    scale = (gamma / jnp.sqrt(running_var + eps)).astype(jnp.float32)
    shift = (beta - running_mean * scale).astype(jnp.float32)

    # Fold the BN scale into the conv weights (exact):
    #   Conv(BN(x)) = Conv_{w*scale}(x, zero-pad) + Conv_w(shift over interior)
    w_fold = w * scale[None, :, None, None]                    # (Cout, Cin, 3, 3)
    # w_mat[o, c*9 + ky*3 + kx] = w_fold[o, c, ky, kx]
    # (matches conv_general_dilated_patches channel ordering: channel-major).
    w_mat = w_fold.reshape(Cout, Cin * KH * KW)                # (Cout, 9*Cin)

    # Position-dependent bias map (exact at the 1-px zero-pad border where
    # fewer valid taps see the BN shift); computed once on a tiny tensor.
    shift_map = jnp.broadcast_to(shift[None, :, None, None], (1, Cin, H, W))
    bias_map = jax.lax.conv_general_dilated(
        shift_map, w, window_strides=(1, 1), padding=((1, 1), (1, 1)),
        dimension_numbers=("NCHW", "OIHW", "NCHW"))            # (1, Cout, H, W)
    bias_mat = bias_map.reshape(Cout, H * W).astype(jnp.float32)
    return w_mat, bias_mat


def single_layer_forward(x_nchw, w_mat, bias_mat):
    N, Cin, H, W = x_nchw.shape
    Cout, K = w_mat.shape
    HW = H * W
    x = x_nchw.astype(jnp.float32)

    # im2col with one fused op (no pad + 9 slices + stack materialization):
    #   patches[n, c*9 + ky*3 + kx, h*W + w] = xpad[n, c, h+ky, w+kx]
    patches = jax.lax.conv_general_dilated_patches(
        x, filter_shape=(3, 3), window_strides=(1, 1),
        padding=((1, 1), (1, 1)),
        dimension_numbers=("NCHW", "OIHW", "NCHW")).reshape(N, K, HW)

    out = pl.pallas_call(
        single_layer_kernel,
        out_shape=jax.ShapeDtypeStruct((N, Cin + Cout, HW), jnp.float32),
        grid=(1,),  # single invocation: whole problem fits VMEM with huge margin
        in_specs=[
            pl.BlockSpec((N, Cin, HW), lambda i: (0, 0, 0)),
            pl.BlockSpec((N, K, HW), lambda i: (0, 0, 0)),
            pl.BlockSpec((Cout, K), lambda i: (0, 0)),
            pl.BlockSpec((Cout, HW), lambda i: (0, 0)),
        ],
        out_specs=pl.BlockSpec((N, Cin + Cout, HW), lambda i: (0, 0, 0)),
    )(x.reshape(N, Cin, HW), patches, w_mat, bias_mat)

    return out.reshape(N, Cin + Cout, H, W)


def reference_forward(x_nchw, gamma, beta, running_mean, running_var, w_oihw,
                      eps=1e-5):
    x = x_nchw.astype(jnp.float32)
    xb = (x - running_mean[None, :, None, None]) / jnp.sqrt(
        running_var[None, :, None, None] + eps)
    xb = xb * gamma[None, :, None, None] + beta[None, :, None, None]
    conv = jax.lax.conv_general_dilated(
        xb, w_oihw.astype(jnp.float32), window_strides=(1, 1),
        padding=((1, 1), (1, 1)),
        dimension_numbers=("NCHW", "OIHW", "NCHW"))
    out = jnp.maximum(conv, 0.0)
    return jnp.concatenate([x, out], axis=1)


if __name__ == "__main__":
    N, nChannels, growthRate, H, W = 2, 4, 8, 16, 16

    key = jax.random.PRNGKey(0)
    kx, kg, kb, km, kv, kw = jax.random.split(key, 6)

    x = jax.random.normal(kx, (N, nChannels, H, W), dtype=jnp.float32)

    # Deterministic synthetic parameters (BatchNorm2d + Conv2d, bias=False).
    gamma = 1.0 + 0.1 * jax.random.normal(kg, (nChannels,), dtype=jnp.float32)
    beta = 0.1 * jax.random.normal(kb, (nChannels,), dtype=jnp.float32)
    running_mean = 0.1 * jax.random.normal(km, (nChannels,), dtype=jnp.float32)
    running_var = 1.0 + 0.1 * jax.random.uniform(kv, (nChannels,), dtype=jnp.float32)
    w_std = float(np.sqrt(2.0 / (nChannels * 3 * 3)))  # kaiming-like
    w = w_std * jax.random.normal(kw, (growthRate, nChannels, 3, 3), dtype=jnp.float32)

    # Per-layer preprocessing: done ONCE, outside the per-forward path.
    w_mat, bias_mat = prepare_single_layer_params(
        gamma, beta, running_mean, running_var, w, H, W)

    forward = jax.jit(single_layer_forward)
    out = forward(x, w_mat, bias_mat)
    out = jax.block_until_ready(out)

    ref = reference_forward(x, gamma, beta, running_mean, running_var, w)
    np.testing.assert_allclose(np.asarray(out), np.asarray(ref),
                               rtol=1e-4, atol=1e-4)
    assert out.shape == (N, nChannels + growthRate, H, W)

    print("KERNEL_OK")
</pallas_src>

<mosaic_0001>
module attributes {stable_mosaic.version = 11 : i64} {
  func.func @single_layer_kernel(%arg0: i32, %arg1: memref<2x4x256xf32, #tpu.memory_space<vmem>>, %arg2: memref<2x36x256xf32, #tpu.memory_space<vmem>>, %arg3: memref<8x36xf32, #tpu.memory_space<vmem>>, %arg4: memref<8x256xf32, #tpu.memory_space<vmem>>, %arg5: memref<2x12x256xf32, #tpu.memory_space<vmem>>) attributes {dimension_semantics = [#tpu.dimension_semantics<arbitrary>], iteration_bounds = array<i64: 1>, scalar_prefetch = 0 : i64, scratch_operands = 0 : i64, tpu.core_type = #tpu.core_type<tc>, window_params = [{pipeline_mode = #tpu.pipeline_mode<synchronous>, transform_indices = @transform_0, window_bounds = array<i64: 2, 4, 256>}, {pipeline_mode = #tpu.pipeline_mode<synchronous>, transform_indices = @transform_1, window_bounds = array<i64: 2, 36, 256>}, {pipeline_mode = #tpu.pipeline_mode<synchronous>, transform_indices = @transform_2, window_bounds = array<i64: 8, 36>}, {pipeline_mode = #tpu.pipeline_mode<synchronous>, transform_indices = @transform_3, window_bounds = array<i64: 8, 256>}, {pipeline_mode = #tpu.pipeline_mode<synchronous>, transform_indices = @transform_4, window_bounds = array<i64: 2, 12, 256>}]} {
    %c0 = arith.constant 0 : index
    %c0_0 = arith.constant 0 : index
    %0 = vector.load %arg3[%c0, %c0_0] : memref<8x36xf32, #tpu.memory_space<vmem>>, vector<8x36xf32>
    %c0_1 = arith.constant 0 : index
    %c0_2 = arith.constant 0 : index
    %1 = vector.load %arg4[%c0_1, %c0_2] : memref<8x256xf32, #tpu.memory_space<vmem>>, vector<8x256xf32>
    %c0_3 = arith.constant 0 : index
    %c0_4 = arith.constant 0 : index
    %c0_5 = arith.constant 0 : index
    %2 = vector.load %arg2[%c0_3, %c0_4, %c0_5] : memref<2x36x256xf32, #tpu.memory_space<vmem>>, vector<1x36x256xf32>
    %3 = vector.shape_cast %2 : vector<1x36x256xf32> to vector<36x256xf32>
    %cst = arith.constant dense<0.000000e+00> : vector<8x256xf32>
    %4 = tpu.matmul %0, %3, %cst {dimension_numbers = #tpu.dot_dimension_numbers<[1], [0], [0], [1], [0, 0, 1, 1], [], []>} : vector<8x36xf32>, vector<36x256xf32>, vector<8x256xf32> -> vector<8x256xf32>
    %c0_6 = arith.constant 0 : index
    %c0_7 = arith.constant 0 : index
    %c0_8 = arith.constant 0 : index
    %5 = vector.load %arg1[%c0_6, %c0_7, %c0_8] : memref<2x4x256xf32, #tpu.memory_space<vmem>>, vector<1x4x256xf32>
    %6 = vector.shape_cast %5 : vector<1x4x256xf32> to vector<4x256xf32>
    %c0_9 = arith.constant 0 : index
    %c0_10 = arith.constant 0 : index
    %c0_11 = arith.constant 0 : index
    %7 = vector.load %arg5[%c0_9, %c0_10, %c0_11] : memref<2x12x256xf32, #tpu.memory_space<vmem>>, vector<1x4x256xf32>
    %8 = vector.shape_cast %7 : vector<1x4x256xf32> to vector<4x256xf32>
    %9 = vector.shape_cast %6 : vector<4x256xf32> to vector<1x4x256xf32>
    tpu.vector_store %arg5[%c0_9, %c0_10, %c0_11], %9 {strides = array<i32>} : memref<2x12x256xf32, #tpu.memory_space<vmem>>, vector<1x4x256xf32>,
    %10 = arith.addf %4, %1 : vector<8x256xf32>
    %cst_12 = arith.constant 0.000000e+00 : f32
    %11 = vector.broadcast %cst_12 : f32 to vector<8x256xf32>
    %12 = arith.maximumf %10, %11 : vector<8x256xf32>
    %c0_13 = arith.constant 0 : index
    %c4 = arith.constant 4 : index
    %c0_14 = arith.constant 0 : index
    %13 = vector.load %arg5[%c0_13, %c4, %c0_14] : memref<2x12x256xf32, #tpu.memory_space<vmem>>, vector<1x8x256xf32>
    %14 = vector.shape_cast %13 : vector<1x8x256xf32> to vector<8x256xf32>
    %15 = vector.shape_cast %12 : vector<8x256xf32> to vector<1x8x256xf32>
    tpu.vector_store %arg5[%c0_13, %c4, %c0_14], %15 {strides = array<i32>} : memref<2x12x256xf32, #tpu.memory_space<vmem>>, vector<1x8x256xf32>,
    %c1 = arith.constant 1 : index
    %c0_15 = arith.constant 0 : index
    %c0_16 = arith.constant 0 : index
    %16 = vector.load %arg2[%c1, %c0_15, %c0_16] : memref<2x36x256xf32, #tpu.memory_space<vmem>>, vector<1x36x256xf32>
    %17 = vector.shape_cast %16 : vector<1x36x256xf32> to vector<36x256xf32>
    %cst_17 = arith.constant dense<0.000000e+00> : vector<8x256xf32>
    %18 = tpu.matmul %0, %17, %cst_17 {dimension_numbers = #tpu.dot_dimension_numbers<[1], [0], [0], [1], [0, 0, 1, 1], [], []>} : vector<8x36xf32>, vector<36x256xf32>, vector<8x256xf32> -> vector<8x256xf32>
    %c1_18 = arith.constant 1 : index
    %c0_19 = arith.constant 0 : index
    %c0_20 = arith.constant 0 : index
    %19 = vector.load %arg1[%c1_18, %c0_19, %c0_20] : memref<2x4x256xf32, #tpu.memory_space<vmem>>, vector<1x4x256xf32>
    %20 = vector.shape_cast %19 : vector<1x4x256xf32> to vector<4x256xf32>
    %c1_21 = arith.constant 1 : index
    %c0_22 = arith.constant 0 : index
    %c0_23 = arith.constant 0 : index
    %21 = vector.load %arg5[%c1_21, %c0_22, %c0_23] : memref<2x12x256xf32, #tpu.memory_space<vmem>>, vector<1x4x256xf32>
    %22 = vector.shape_cast %21 : vector<1x4x256xf32> to vector<4x256xf32>
    %23 = vector.shape_cast %20 : vector<4x256xf32> to vector<1x4x256xf32>
    tpu.vector_store %arg5[%c1_21, %c0_22, %c0_23], %23 {strides = array<i32>} : memref<2x12x256xf32, #tpu.memory_space<vmem>>, vector<1x4x256xf32>,
    %24 = arith.addf %18, %1 : vector<8x256xf32>
    %cst_24 = arith.constant 0.000000e+00 : f32
    %25 = vector.broadcast %cst_24 : f32 to vector<8x256xf32>
    %26 = arith.maximumf %24, %25 : vector<8x256xf32>
    %c1_25 = arith.constant 1 : index
    %c4_26 = arith.constant 4 : index
    %c0_27 = arith.constant 0 : index
    %27 = vector.load %arg5[%c1_25, %c4_26, %c0_27] : memref<2x12x256xf32, #tpu.memory_space<vmem>>, vector<1x8x256xf32>
    %28 = vector.shape_cast %27 : vector<1x8x256xf32> to vector<8x256xf32>
    %29 = vector.shape_cast %26 : vector<8x256xf32> to vector<1x8x256xf32>
    tpu.vector_store %arg5[%c1_25, %c4_26, %c0_27], %29 {strides = array<i32>} : memref<2x12x256xf32, #tpu.memory_space<vmem>>, vector<1x8x256xf32>,
    return
  }
  func.func @transform_0(%arg0: i32) -> (i32, i32, i32) {
    %c0_i32 = arith.constant 0 : i32
    %c0_i32_0 = arith.constant 0 : i32
    %c0_i32_1 = arith.constant 0 : i32
    %c0_i32_2 = arith.constant 0 : i32
    return %c0_i32, %c0_i32_0, %c0_i32_1 : i32, i32, i32
  }
  func.func @transform_1(%arg0: i32) -> (i32, i32, i32) {
    %c0_i32 = arith.constant 0 : i32
    %c0_i32_0 = arith.constant 0 : i32
    %c0_i32_1 = arith.constant 0 : i32
    %c0_i32_2 = arith.constant 0 : i32
    return %c0_i32, %c0_i32_0, %c0_i32_1 : i32, i32, i32
  }
  func.func @transform_2(%arg0: i32) -> (i32, i32) {
    %c0_i32 = arith.constant 0 : i32
    %c0_i32_0 = arith.constant 0 : i32
    %c0_i32_1 = arith.constant 0 : i32
    return %c0_i32, %c0_i32_0 : i32, i32
  }
  func.func @transform_3(%arg0: i32) -> (i32, i32) {
    %c0_i32 = arith.constant 0 : i32
    %c0_i32_0 = arith.constant 0 : i32
    %c0_i32_1 = arith.constant 0 : i32
    return %c0_i32, %c0_i32_0 : i32, i32
  }
  func.func @transform_4(%arg0: i32) -> (i32, i32, i32) {
    %c0_i32 = arith.constant 0 : i32
    %c0_i32_0 = arith.constant 0 : i32
    %c0_i32_1 = arith.constant 0 : i32
    %c0_i32_2 = arith.constant 0 : i32
    return %c0_i32, %c0_i32_0, %c0_i32_1 : i32, i32, i32
  }
}

</mosaic_0001>

<llo_original>
// kernel: single_layer_forward.1
$region0: #{single_layer_forward.1}
  #allocation0 [shape = 'u32[]', space=smem, size = 0x4, offset = 0x4, fixed_abs, tag = 'smem constant byte address 0x4 - core index']
  #allocation1 [shape = 'u32[72,128]{1,0:T(1,128)}', space=vmem, size = 0x9000, scoped, tag = 'internal scratch']
  %s0 = inlined_call_operand.vmem [shape: f32[2,4,256], index: 0, kind: input, shape index: {}]
  %s1 = inlined_call_operand.vmem [shape: f32[2,36,256], index: 1, kind: input, shape index: {}]
  %s2 = inlined_call_operand.vmem [shape: f32[8,36], index: 2, kind: input, shape index: {}]
  %s3 = inlined_call_operand.vmem [shape: f32[8,256], index: 3, kind: input, shape index: {}]
  %s4 = inlined_call_operand.vmem [shape: f32[2,12,256], index: 4, kind: output, shape index: {}]
  %s5 = sld [smem:[#allocation0]]
  $region26: #{single_layer_forward.1} parent=0
    _
  %s7 = ssub.s32 1, %s5
  %s8 = scalar_select 0, %s7, %s5
  // Predicated region
  $region2: #{single_layer_forward.1} parent=0 // pred_check
    _
  $region3: #{single_layer_forward.1} parent=0 // pred_check_branch
    %10 = sbr.rel (0) target = $region5
  $region4: #{single_layer_forward.1} parent=0 // pred_region
    _
  $region5: #{single_layer_forward.1} parent=0 // pred_fallthru
    _
  // Predicated region
  $region6: #{single_layer_forward.1} parent=0 // pred_check
    _
  $region7: #{single_layer_forward.1} parent=0 // pred_check_branch
    %12 = sbr.rel (0) target = $region9
  $region8: #{single_layer_forward.1} parent=0 // pred_region
    _
  $region9: #{single_layer_forward.1} parent=0 // pred_fallthru
    _
  // Predicated region
  $region10: #{single_layer_forward.1} parent=0 // pred_check
    _
  $region11: #{single_layer_forward.1} parent=0 // pred_check_branch
    %14 = sbr.rel (0) target = $region13
  $region12: #{single_layer_forward.1} parent=0 // pred_region
    _
  $region13: #{single_layer_forward.1} parent=0 // pred_fallthru
    _
  // Predicated region
  $region14: #{single_layer_forward.1} parent=0 // pred_check
    _
  $region15: #{single_layer_forward.1} parent=0 // pred_check_branch
    %16 = sbr.rel (0) target = $region17
  $region16: #{single_layer_forward.1} parent=0 // pred_region
    _
  $region17: #{single_layer_forward.1} parent=0 // pred_fallthru
    _
  %v17 = vld [vmem:[%s2] sm:$0xff]
  %v18 = vld [vmem:[%s3] sm:$0xff]
  %v19 = vld [vmem:[%s3 + $0x8] sm:$0xff]
  %v20 = vld [vmem:[%s1] sm:$0xff]
  %v21 = vld [vmem:[%s1 + $0x8] sm:$0xff]
  %v22 = vld [vmem:[%s1 + $0x10] sm:$0xff]
  %v23 = vld [vmem:[%s1 + $0x18] sm:$0xff]
  %v24 = vld [vmem:[%s1 + $0x20] sm:$0xff]
  %v25 = vld [vmem:[%s1 + $0x28] sm:$0xff]
  %v26 = vld [vmem:[%s1 + $0x30] sm:$0xff]
  %v27 = vld [vmem:[%s1 + $0x38] sm:$0xff]
  %v28 = vld [vmem:[%s1 + $0x40] sm:$0xf]
  %v29 = vld [vmem:[%s1 + $0x48] sm:$0xf]
  %v30 = vld [vmem:[%s0] sm:$0xff]
  %32 = vst [vmem:[#allocation1] ss:$2 sm:$0xff] %v30
  %v33 = vld.sshfl [vmem:[#allocation1] sm:$0xff pattern:$0x75316420]
  %v34 = vld.sshfl [vmem:[#allocation1 + $0x8] sm:$0xff pattern:$0x75316420]
  %37 = vst [vmem:[%s4] sm:$0xf] %v33
  %38 = vst [vmem:[%s4 + $0x8] sm:$0xf] %v34
  %vm39 = vcmask 293888
  %v41 = vsel %vm39, %v17, 0
  %vm43 = vcmask 1043456
  %v45 = vsel %vm43, %v28, 0
  %v48 = vsel %vm43, %v29, 0
  %50 = vmatpush.msra.mxu0 0.0
  %51 = vmatpush.msra.mxu0 0.0
  %52 = vmatpush.msra.mxu0 0.0
  %53 = vmatpush.msra.mxu0 0.0
  %54 = vmatpush.msra.mxu0 0.0
  %55 = vmatpush.msra.mxu0 0.0
  %56 = vmatpush.msra.mxu0 0.0
  %57 = vmatpush.msra.mxu0 0.0
  %58 = vmatpush.msra.mxu0 0.0
  %59 = vmatpush.msra.mxu0 0.0
  %60 = vmatpush.msra.mxu0 0.0
  %61 = vmatpush.msra.mxu0 %v45
  %62 = vmatpush.msra.mxu0 %v26
  %63 = vmatpush.msra.mxu0 %v24
  %64 = vmatpush.msra.mxu0 %v22
  %65 = vmatpush.msra.mxu0 %v20
  %66 = vmatmul.f32.gmra.mxu0 %v41
  %v67 = vpop.f32.mrf.mxu0
  %v68 = vadd.f32 %v18, %v67
  %69 = vdwg.mxu0
  %70 = vmatpush.msra.mxu0 0.0
  %71 = vmatpush.msra.mxu0 0.0
  %72 = vmatpush.msra.mxu0 0.0
  %73 = vmatpush.msra.mxu0 0.0
  %74 = vmatpush.msra.mxu0 0.0
  %75 = vmatpush.msra.mxu0 0.0
  %76 = vmatpush.msra.mxu0 0.0
  %77 = vmatpush.msra.mxu0 0.0
  %78 = vmatpush.msra.mxu0 0.0
  %79 = vmatpush.msra.mxu0 0.0
  %80 = vmatpush.msra.mxu0 0.0
  %81 = vmatpush.msra.mxu0 %v48
  %82 = vmatpush.msra.mxu0 %v27
  %83 = vmatpush.msra.mxu0 %v25
  %84 = vmatpush.msra.mxu0 %v23
  %85 = vmatpush.msra.mxu0 %v21
  %86 = vmatmul.f32.gmra.mxu0 %v41
  %v87 = vpop.f32.mrf.mxu0
  %v88 = vadd.f32 %v19, %v87
  %89 = vdwg.mxu0
  %v90 = vmax.f32 %v68, 0.0
  %v91 = vmax.f32 %v88, 0.0
  %v94 = vrot.slane %v90, 4
  %v95 = vrot.slane %v91, 4
  %98 = vst [vmem:[%s4] sm:$0xf0] %v94
  %99 = vst [vmem:[%s4 + $0x8] sm:$0xf0] %v95
  %100 = vst [vmem:[%s4 + $0x10] sm:$0xf] %v94
  %101 = vst [vmem:[%s4 + $0x18] sm:$0xf] %v95
  %s102 = scalar_lea.vmem %s1, 80
  %v103 = vld [vmem:[%s102] sm:$0xff]
  %v104 = vld [vmem:[%s102 + $0x8] sm:$0xff]
  %v105 = vld [vmem:[%s102 + $0x10] sm:$0xff]
  %v106 = vld [vmem:[%s102 + $0x18] sm:$0xff]
  %v107 = vld [vmem:[%s102 + $0x20] sm:$0xff]
  %v108 = vld [vmem:[%s102 + $0x28] sm:$0xff]
  %v109 = vld [vmem:[%s102 + $0x30] sm:$0xff]
  %v110 = vld [vmem:[%s102 + $0x38] sm:$0xff]
  %v111 = vld [vmem:[%s102 + $0x40] sm:$0xf]
  %v112 = vld [vmem:[%s102 + $0x48] sm:$0xf]
  %s113 = scalar_lea.vmem %s0, 8
  %v114 = vld [vmem:[%s113] sm:$0xff]
  %116 = vst [vmem:[#allocation1] ss:$2 sm:$0xff] %v114
  %v117 = vld.sshfl [vmem:[#allocation1] sm:$0xff pattern:$0x75316420]
  %v118 = vld.sshfl [vmem:[#allocation1 + $0x8] sm:$0xff pattern:$0x75316420]
  %s121 = scalar_lea.vmem %s4, 32
  %122 = vst [vmem:[%s121] sm:$0xf] %v117
  %123 = vst [vmem:[%s121 + $0x8] sm:$0xf] %v118
  %v125 = vsel %vm43, %v111, 0
  %v128 = vsel %vm43, %v112, 0
  %130 = vmatpush.msra.mxu0 0.0
  %131 = vmatpush.msra.mxu0 0.0
  %132 = vmatpush.msra.mxu0 0.0
  %133 = vmatpush.msra.mxu0 0.0
  %134 = vmatpush.msra.mxu0 0.0
  %135 = vmatpush.msra.mxu0 0.0
  %136 = vmatpush.msra.mxu0 0.0
  %137 = vmatpush.msra.mxu0 0.0
  %138 = vmatpush.msra.mxu0 0.0
  %139 = vmatpush.msra.mxu0 0.0
  %140 = vmatpush.msra.mxu0 0.0
  %141 = vmatpush.msra.mxu0 %v125
  %142 = vmatpush.msra.mxu0 %v109
  %143 = vmatpush.msra.mxu0 %v107
  %144 = vmatpush.msra.mxu0 %v105
  %145 = vmatpush.msra.mxu0 %v103
  %146 = vmatmul.f32.gmra.mxu0 %v41
  %v147 = vpop.f32.mrf.mxu0
  %v148 = vadd.f32 %v18, %v147
  %149 = vdwg.mxu0
  %150 = vmatpush.msra.mxu0 0.0
  %151 = vmatpush.msra.mxu0 0.0
  %152 = vmatpush.msra.mxu0 0.0
  %153 = vmatpush.msra.mxu0 0.0
  %154 = vmatpush.msra.mxu0 0.0
  %155 = vmatpush.msra.mxu0 0.0
  %156 = vmatpush.msra.mxu0 0.0
  %157 = vmatpush.msra.mxu0 0.0
  %158 = vmatpush.msra.mxu0 0.0
  %159 = vmatpush.msra.mxu0 0.0
  %160 = vmatpush.msra.mxu0 0.0
  %161 = vmatpush.msra.mxu0 %v128
  %162 = vmatpush.msra.mxu0 %v110
  %163 = vmatpush.msra.mxu0 %v108
  %164 = vmatpush.msra.mxu0 %v106
  %165 = vmatpush.msra.mxu0 %v104
  %166 = vmatmul.f32.gmra.mxu0 %v41
  %v167 = vpop.f32.mrf.mxu0
  %v168 = vadd.f32 %v19, %v167
  %169 = vdwg.mxu0
  %v170 = vmax.f32 %v148, 0.0
  %v171 = vmax.f32 %v168, 0.0
  %v174 = vrot.slane %v170, 4
  %v175 = vrot.slane %v171, 4
  %178 = vst [vmem:[%s121] sm:$0xf0] %v174
  %179 = vst [vmem:[%s121 + $0x8] sm:$0xf0] %v175
  %180 = vst [vmem:[%s121 + $0x10] sm:$0xf] %v174
  %181 = vst [vmem:[%s121 + $0x18] sm:$0xf] %v175
  // Predicated region
  $region18: #{single_layer_forward.1} parent=0 // pred_check
    _
  $region19: #{single_layer_forward.1} parent=0 // pred_check_branch
    %183 = sbr.rel (0) target = $region21
  $region20: #{single_layer_forward.1} parent=0 // pred_region
    _
  $region21: #{single_layer_forward.1} parent=0 // pred_fallthru
    _
  // Predicated region
  $region22: #{single_layer_forward.1} parent=0 // pred_check
    _
  $region23: #{single_layer_forward.1} parent=0 // pred_check_branch
    %185 = sbr.rel (0) target = $region25
  $region24: #{single_layer_forward.1} parent=0 // pred_region
    _
  $region25: #{single_layer_forward.1} parent=0 // pred_fallthru
    _

</llo_original>
